<compile_context>
chip_gen: v5e
topology: v5e:2x2
jax: 0.10.0
libtpu: 0.0.40
codegen_flags: <defaults>
</compile_context>

<pallas_src>
import functools

import jax
import jax.numpy as jnp
from jax.experimental import pallas as pl
from jax.experimental.pallas import tpu as pltpu

LANES = 128
SUBLANES = 8
MAX_TILE_ROWS = 4096                      # (4096, 128) f32 = 2 MiB per stream
VMEM_LIMIT_BYTES = 48 * 1024 * 1024       # headroom for big tiles; < v7x 64 MiB


def _cdiv(a, b):
    return -(-a // b)


def _round_up(a, b):
    return _cdiv(a, b) * b


def _focal_loss_terms(x, y, alpha, gamma):
    """Elementwise focal loss in f32. Shares one exp(-|x|) between BCE & sigmoid."""
    e = jnp.exp(-jnp.abs(x))                              # single EUP exp, reused
    ce = jnp.maximum(x, 0.0) - x * y + jnp.log1p(e)       # stable BCE-with-logits
    inv = pl.reciprocal(1.0 + e, approx=False)            # exact (tests at 1e-5)
    p = jnp.where(x >= 0.0, inv, e * inv)                 # sigmoid(x), reusing e
    ym = 2.0 * y - 1.0
    q = y - p * ym                                        # == 1 - p_t (exact, soft labels OK)
    a_t = (1.0 - alpha) + (2.0 * alpha - 1.0) * y         # alpha_t folded to one FMA
    mod = q * q if gamma == 2.0 else q ** gamma           # γ==2 fast path
    return a_t * mod * ce


def _focal_partial_sum_kernel(x_ref, y_ref, out_ref, *, alpha, gamma,
                              tail_valid, mask_tail):
    """Per-tile partial sums folded to one (8,128) block (pure VPU adds)."""
    x = x_ref[...].astype(jnp.float32)
    y = y_ref[...].astype(jnp.float32)
    loss = _focal_loss_terms(x, y, alpha, gamma)          # (tile_rows, 128)
    t = loss.shape[0]

    def fold(v):
        # Fold sublane-groups (native (8,128) tiles) with elementwise vreg adds;
        # the only cross-lane reduction happens once, outside the kernel.
        return v.reshape(t // SUBLANES, SUBLANES, LANES).sum(axis=0)

    if mask_tail:  # static: last tile has zero-padding and/or ragged OOB garbage
        is_last = pl.program_id(0) == pl.num_programs(0) - 1

        @pl.when(is_last)
        def _():
            idx = (jax.lax.broadcasted_iota(jnp.int32, loss.shape, 0) * LANES
                   + jax.lax.broadcasted_iota(jnp.int32, loss.shape, 1))
            out_ref[...] = fold(jnp.where(idx < tail_valid, loss, 0.0))

        @pl.when(jnp.logical_not(is_last))
        def _():
            out_ref[...] = fold(loss)     # common path: no mask work at all
    else:
        out_ref[...] = fold(loss)


def _focal_elementwise_kernel(x_ref, y_ref, out_ref, *, alpha, gamma):
    x = x_ref[...].astype(jnp.float32)
    y = y_ref[...].astype(jnp.float32)
    out_ref[...] = _focal_loss_terms(x, y, alpha, gamma).astype(out_ref.dtype)


def binary_focal_loss(inputs, targets, alpha=0.25, gamma=2.0,
                      reduction="mean", out_dtype=None):
    """Pallas TPU implementation of BinaryFocalLoss.forward."""
    assert inputs.shape == targets.shape
    orig_shape = inputs.shape
    n = int(inputs.size)
    alpha = float(alpha)
    gamma = float(gamma)

    # Keep native dtype on the HBM streams (cast to f32 inside the kernel).
    x_flat = inputs.reshape(-1)
    y_flat = targets.reshape(-1)

    # Pad only to (8,128)-tile granularity; the ragged last grid block is
    # handled in-kernel (sum path) / by OOB-write drop + final slice ('none').
    total_rows = _round_up(n, SUBLANES * LANES) // LANES      # multiple of 8
    n_pad = total_rows * LANES - n
    if n_pad:  # only when n % 1024 != 0 — avoids a full extra read+write pass
        x_flat = jnp.pad(x_flat, (0, n_pad))
        y_flat = jnp.pad(y_flat, (0, n_pad))
    x2 = x_flat.reshape(total_rows, LANES)
    y2 = y_flat.reshape(total_rows, LANES)

    # >= 2 grid steps whenever possible (megacore on v7x), capped at 2 MiB tiles.
    tile_rows = max(SUBLANES,
                    min(MAX_TILE_ROWS,
                        _round_up(_cdiv(total_rows, 2), SUBLANES)))
    n_tiles = _cdiv(total_rows, tile_rows)
    tile_elems = tile_rows * LANES

    in_spec = pl.BlockSpec((tile_rows, LANES), lambda i: (i, 0))
    cparams = pltpu.CompilerParams(dimension_semantics=("parallel",),
                                   vmem_limit_bytes=VMEM_LIMIT_BYTES)

    if reduction == "none":
        if out_dtype is None:
            out_dtype = jnp.promote_types(inputs.dtype, targets.dtype)
        out2 = pl.pallas_call(
            functools.partial(_focal_elementwise_kernel, alpha=alpha, gamma=gamma),
            out_shape=jax.ShapeDtypeStruct((total_rows, LANES), out_dtype),
            grid_spec=pltpu.PrefetchScalarGridSpec(
                num_scalar_prefetch=0,
                grid=(n_tiles,),
                in_specs=[in_spec, in_spec],
                out_specs=pl.BlockSpec((tile_rows, LANES), lambda i: (i, 0))),
            compiler_params=cparams,
        )(x2, y2)
        return out2.reshape(-1)[:n].reshape(orig_shape)

    if reduction not in ("mean", "sum"):
        # TODO(synk): 'batchwise_mean' (sum over dim 0) not implemented in kernel.
        raise NotImplementedError(reduction)

    tail_valid = n - (n_tiles - 1) * tile_elems   # valid elements in last tile
    mask_tail = n < n_tiles * tile_elems          # static: any padding/ragged tail?

    partials = pl.pallas_call(
        functools.partial(_focal_partial_sum_kernel, alpha=alpha, gamma=gamma,
                          tail_valid=tail_valid, mask_tail=mask_tail),
        out_shape=jax.ShapeDtypeStruct((n_tiles * SUBLANES, LANES), jnp.float32),
        grid_spec=pltpu.PrefetchScalarGridSpec(
            num_scalar_prefetch=0,
            grid=(n_tiles,),
            in_specs=[in_spec, in_spec],
            out_specs=pl.BlockSpec((SUBLANES, LANES), lambda i: (i, 0))),
        compiler_params=cparams,
    )(x2, y2)

    total = jnp.sum(partials)   # tiny cross-lane tree reduction outside the kernel
    if reduction == "mean":
        return total / n
    return total  # 'sum'


def _reference_elementwise(inputs, targets, alpha=0.25, gamma=2.0):
    x = inputs.astype(jnp.float32)
    y = targets.astype(jnp.float32)
    ce = jnp.maximum(x, 0.0) - x * y + jnp.log1p(jnp.exp(-jnp.abs(x)))
    p = jax.nn.sigmoid(x)
    p_t = p * y + (1.0 - p) * (1.0 - y)
    a_t = alpha * y + (1.0 - alpha) * (1.0 - y)
    return a_t * (1.0 - p_t) ** gamma * ce


if __name__ == "__main__":
    key = jax.random.PRNGKey(0)
    ks = jax.random.split(key, 6)

    # NCHW logits + binary targets, same shape (as BCE-with-logits requires).
    shape = (2, 4, 16, 16)
    logits = jax.random.normal(ks[0], shape, dtype=jnp.float32) * 2.0
    targets = (jax.random.uniform(ks[1], shape) > 0.5).astype(jnp.float32)

    loss = jax.block_until_ready(
        binary_focal_loss(logits, targets, alpha=0.25, gamma=2.0,
                          reduction="mean"))
    ref = jnp.mean(_reference_elementwise(logits, targets))
    assert jnp.allclose(loss, ref, rtol=1e-5, atol=1e-6), (loss, ref)

    loss_none = jax.block_until_ready(
        binary_focal_loss(logits, targets, reduction="none"))
    ref_none = _reference_elementwise(logits, targets)
    assert loss_none.shape == shape
    assert jnp.allclose(loss_none, ref_none, rtol=1e-5, atol=1e-6)

    # Ragged-last-block path (24 rows, 16-row tiles): no jnp.pad, OOB tail masked.
    shape_r = (3, 4, 16, 16)
    logits_r = jax.random.normal(ks[2], shape_r, dtype=jnp.float32) * 2.0
    targets_r = (jax.random.uniform(ks[3], shape_r) > 0.5).astype(jnp.float32)
    ref_r = _reference_elementwise(logits_r, targets_r)
    loss_r_sum = jax.block_until_ready(
        binary_focal_loss(logits_r, targets_r, reduction="sum"))
    assert jnp.allclose(loss_r_sum, jnp.sum(ref_r), rtol=1e-5, atol=1e-5)
    loss_r_none = jax.block_until_ready(
        binary_focal_loss(logits_r, targets_r, reduction="none"))
    assert jnp.allclose(loss_r_none, ref_r, rtol=1e-5, atol=1e-6)

    # Non-tile-aligned shape: exercises jnp.pad + in-kernel tail mask.
    shape2 = (2, 3, 7, 5)
    logits2 = jax.random.normal(ks[4], shape2, dtype=jnp.float32) * 2.0
    targets2 = (jax.random.uniform(ks[5], shape2) > 0.5).astype(jnp.float32)
    ref2 = _reference_elementwise(logits2, targets2)
    loss2_mean = jax.block_until_ready(
        binary_focal_loss(logits2, targets2, reduction="mean"))
    loss2_sum = jax.block_until_ready(
        binary_focal_loss(logits2, targets2, reduction="sum"))
    assert jnp.allclose(loss2_mean, jnp.mean(ref2), rtol=1e-5, atol=1e-6)
    assert jnp.allclose(loss2_sum, jnp.sum(ref2), rtol=1e-5, atol=1e-5)

    # Non-default gamma (pow path) sanity check.
    loss3 = jax.block_until_ready(
        binary_focal_loss(logits2, targets2, gamma=1.5, reduction="mean"))
    ref3 = jnp.mean(_reference_elementwise(logits2, targets2, gamma=1.5))
    assert jnp.allclose(loss3, ref3, rtol=1e-4, atol=1e-6)

    # bf16 inputs with a bf16 'none' output (reduced HBM writeback traffic).
    logits_bf = logits.astype(jnp.bfloat16)
    targets_bf = targets.astype(jnp.bfloat16)
    loss_bf = jax.block_until_ready(
        binary_focal_loss(logits_bf, targets_bf, reduction="none"))
    assert loss_bf.dtype == jnp.bfloat16
    ref_bf = _reference_elementwise(logits_bf, targets_bf)
    assert jnp.allclose(loss_bf.astype(jnp.float32), ref_bf, rtol=2e-2, atol=1e-3)

    print("KERNEL_OK")
</pallas_src>

<mosaic_0001>
module attributes {stable_mosaic.version = 11 : i64} {
  func.func @_focal_partial_sum_kernel(%arg0: i32, %arg1: memref<8x128xf32, #tpu.memory_space<vmem>>, %arg2: memref<8x128xf32, #tpu.memory_space<vmem>>, %arg3: memref<8x128xf32, #tpu.memory_space<vmem>>) attributes {dimension_semantics = [#tpu.dimension_semantics<parallel>], iteration_bounds = array<i64: 2>, scalar_prefetch = 0 : i64, scratch_operands = 0 : i64, tpu.core_type = #tpu.core_type<tc>, window_params = [{transform_indices = @transform_0, window_bounds = array<i64: 8, 128>}, {transform_indices = @transform_1, window_bounds = array<i64: 8, 128>}, {transform_indices = @transform_2, window_bounds = array<i64: 8, 128>}]} {
    %c0 = arith.constant 0 : index
    %c0_0 = arith.constant 0 : index
    %0 = vector.load %arg1[%c0, %c0_0] : memref<8x128xf32, #tpu.memory_space<vmem>>, vector<8x128xf32>
    %c0_1 = arith.constant 0 : index
    %c0_2 = arith.constant 0 : index
    %1 = vector.load %arg2[%c0_1, %c0_2] : memref<8x128xf32, #tpu.memory_space<vmem>>, vector<8x128xf32>
    %2 = math.absf %0 : vector<8x128xf32>
    %cst = arith.constant 0.000000e+00 : f32
    %3 = vector.broadcast %cst : f32 to vector<8x128xf32>
    %4 = arith.subf %3, %2 : vector<8x128xf32>
    %5 = math.exp %4 : vector<8x128xf32>
    %cst_3 = arith.constant 0.000000e+00 : f32
    %6 = vector.broadcast %cst_3 : f32 to vector<8x128xf32>
    %7 = arith.maximumf %0, %6 : vector<8x128xf32>
    %8 = arith.mulf %0, %1 : vector<8x128xf32>
    %9 = arith.subf %7, %8 : vector<8x128xf32>
    %10 = math.log1p %5 : vector<8x128xf32>
    %11 = arith.addf %9, %10 : vector<8x128xf32>
    %cst_4 = arith.constant 1.000000e+00 : f32
    %12 = vector.broadcast %cst_4 : f32 to vector<8x128xf32>
    %13 = arith.addf %12, %5 : vector<8x128xf32>
    %14 = tpu.reciprocal %13 : vector<8x128xf32> -> vector<8x128xf32>
    %cst_5 = arith.constant 0.000000e+00 : f32
    %15 = vector.broadcast %cst_5 : f32 to vector<8x128xf32>
    %16 = arith.cmpf oge, %0, %15 : vector<8x128xf32>
    %17 = arith.mulf %5, %14 : vector<8x128xf32>
    %18 = arith.select %16, %14, %17 : vector<8x128xi1>, vector<8x128xf32>
    %cst_6 = arith.constant 2.000000e+00 : f32
    %19 = vector.broadcast %cst_6 : f32 to vector<8x128xf32>
    %20 = arith.mulf %19, %1 : vector<8x128xf32>
    %cst_7 = arith.constant 1.000000e+00 : f32
    %21 = vector.broadcast %cst_7 : f32 to vector<8x128xf32>
    %22 = arith.subf %20, %21 : vector<8x128xf32>
    %23 = arith.mulf %18, %22 : vector<8x128xf32>
    %24 = arith.subf %1, %23 : vector<8x128xf32>
    %cst_8 = arith.constant -5.000000e-01 : f32
    %25 = vector.broadcast %cst_8 : f32 to vector<8x128xf32>
    %26 = arith.mulf %25, %1 : vector<8x128xf32>
    %cst_9 = arith.constant 7.500000e-01 : f32
    %27 = vector.broadcast %cst_9 : f32 to vector<8x128xf32>
    %28 = arith.addf %27, %26 : vector<8x128xf32>
    %29 = arith.mulf %24, %24 : vector<8x128xf32>
    %30 = arith.mulf %28, %29 : vector<8x128xf32>
    %31 = arith.mulf %30, %11 : vector<8x128xf32>
    %32 = vector.shape_cast %31 : vector<8x128xf32> to vector<1x8x128xf32>
    %cst_10 = arith.constant dense<0.000000e+00> : vector<8x128xf32>
    %33 = vector.multi_reduction <add>, %32, %cst_10 [0] : vector<1x8x128xf32> to vector<8x128xf32>
    %c0_11 = arith.constant 0 : index
    %c0_12 = arith.constant 0 : index
    %34 = vector.load %arg3[%c0_11, %c0_12] : memref<8x128xf32, #tpu.memory_space<vmem>>, vector<8x128xf32>
    tpu.vector_store %arg3[%c0_11, %c0_12], %33 {strides = array<i32>} : memref<8x128xf32, #tpu.memory_space<vmem>>, vector<8x128xf32>,
    return
  }
  func.func @transform_0(%arg0: i32) -> (i32, i32) {
    %c0_i32 = arith.constant 0 : i32
    %c0_i32_0 = arith.constant 0 : i32
    return %arg0, %c0_i32 : i32, i32
  }
  func.func @transform_1(%arg0: i32) -> (i32, i32) {
    %c0_i32 = arith.constant 0 : i32
    %c0_i32_0 = arith.constant 0 : i32
    return %arg0, %c0_i32 : i32, i32
  }
  func.func @transform_2(%arg0: i32) -> (i32, i32) {
    %c0_i32 = arith.constant 0 : i32
    %c0_i32_0 = arith.constant 0 : i32
    return %arg0, %c0_i32 : i32, i32
  }
}

</mosaic_0001>

<llo_original>
// kernel: tpu_custom_call.1
$region0: #{tpu_custom_call.1}
  #allocation0 [shape = 'u32[]', space=smem, size = 0x4, offset = 0x4, fixed_abs, tag = 'smem constant byte address 0x4 - core index']
  #allocation1 [shape = 'u32[72,128]{1,0:T(1,128)}', space=vmem, size = 0x9000, scoped, tag = 'internal scratch']
  %s0 = inlined_call_operand.hbm [shape: f32[16,128], index: 0, kind: input, shape index: {}]
  %s1 = inlined_call_operand.hbm [shape: f32[16,128], index: 1, kind: input, shape index: {}]
  %s2 = inlined_call_operand.hbm [shape: f32[16,128], index: 2, kind: output, shape index: {}]
  %s3 = sld [smem:[#allocation0]]
  $region49: #{tpu_custom_call.1} parent=0
    _
  %s5 = ssub.s32 1, %s3
  %s6 = scalar_select 0, %s5, %s3
  $region1: #{tpu_custom_call.1} parent=0
    #allocation2 [shape = 'u8[8192]{0}', space=vmem, size = 0x2000, scoped, tag = 'input window, operand 0']
    #allocation3 [shape = 's32[2]{0}', space=sflag, size = 0x8, scoped, tag = 'scoped memory for tpu_custom_call.1']
    #allocation4 [shape = 's32[2]{0}', space=sflag, size = 0x8, scoped, tag = 'scoped memory for tpu_custom_call.1']
    #allocation5 [shape = 'u8[8192]{0}', space=vmem, size = 0x2000, scoped, tag = 'input window, operand 1']
    #allocation6 [shape = 's32[2]{0}', space=sflag, size = 0x8, scoped, tag = 'scoped memory for tpu_custom_call.1']
    #allocation7 [shape = 'u8[8192]{0}', space=vmem, size = 0x2000, scoped, tag = 'output window, operand 0']
    %7 = vsyncpa [#allocation3], 0
    %s8 = scalar_lea.sflag [#allocation3], 1
    %9 = vsyncpa %s8, 0
    %10 = vsyncpa [#allocation6], 0
    %s11 = scalar_lea.sflag [#allocation6], 1
    %12 = vsyncpa %s11, 0
    %13 = vsyncpa [#allocation4], 0
    %s14 = scalar_lea.sflag [#allocation4], 1
    %15 = vsyncpa %s14, 0
    loop: start=0, step=1, limit=4
    $region2: #{tpu_custom_call.1} parent=1 // loop_pre_header
      _
    $region3: #{tpu_custom_call.1} parent=1 // loop_header
      %s17 = sphi 0, %s21
      %p18 = scmp.ge.s32.totalorder %s17, 4
      %s27 = sphi 0, %s29
      %s30 = sphi 0, %s27
      %s31 = sphi 0, %s30
      %s47 = sphi 0, %s31
      %s53 = sphi 0, %s55
      %s56 = sphi 0, %s53
      %s57 = sphi 0, %s56
      %s73 = sphi 0, %s57
      %s79 = sphi 0, %s81
      %s82 = sphi 0, %s79
      %s83 = sphi 0, %s82
      %s99 = sphi 0, %s83
    $region4: #{tpu_custom_call.1} parent=1 // loop_header_branch
      %20 = sbr.rel (%p18) target = $region8
    $region5: #{tpu_custom_call.1} parent=1 // loop_body
      %s22 = ssub.s32 %s17, 1
      %s23 = ssub.s32 %s17, 2
      %s24 = sadd.s32 %s17, 1
      %s25 = ssub.s32 %s17, %s24
      %p26 = scmp.eq.s32.totalorder %s25, 0
      %s28 = sadd.s32 %s27, 1
      %s29 = scalar_select %p26, %s27, %s28
      %p32 = pneg %p26
      %p33 = scmp.eq.s32.totalorder %s17, 1
      %p34 = por %p32, %p33
      %p35 = scmp.ne.s32.totalorder %s27, %s30
      %p36 = scmp.eq.s32.totalorder %s17, 0
      %p37 = por %p35, %p36
      %p38 = scmp.ne.s32.totalorder %s27, %s30
      %p39 = scmp.eq.s32.totalorder %s22, 1
      %p40 = por %p38, %p39
      %p41 = scmp.ne.s32.totalorder %s30, %s31
      %p42 = scmp.eq.s32.totalorder %s22, 0
      %p43 = por %p41, %p42
      %p44 = scmp.ne.s32.totalorder %s30, %s31
      %p45 = scmp.eq.s32.totalorder %s23, 1
      %p46 = por %p44, %p45
      %p48 = scmp.ne.s32.totalorder %s31, %s47
      %p49 = scmp.eq.s32.totalorder %s23, 0
      %p50 = por %p48, %p49
      %s51 = ssub.s32 %s17, %s24
      %p52 = scmp.eq.s32.totalorder %s51, 0
      %s54 = sadd.s32 %s53, 1
      %s55 = scalar_select %p52, %s53, %s54
      %p58 = pneg %p52
      %p59 = scmp.eq.s32.totalorder %s17, 1
      %p60 = por %p58, %p59
      %p61 = scmp.ne.s32.totalorder %s53, %s56
      %p62 = scmp.eq.s32.totalorder %s17, 0
      %p63 = por %p61, %p62
      %p64 = scmp.ne.s32.totalorder %s53, %s56
      %p65 = scmp.eq.s32.totalorder %s22, 1
      %p66 = por %p64, %p65
      %p67 = scmp.ne.s32.totalorder %s56, %s57
      %p68 = scmp.eq.s32.totalorder %s22, 0
      %p69 = por %p67, %p68
      %p70 = scmp.ne.s32.totalorder %s56, %s57
      %p71 = scmp.eq.s32.totalorder %s23, 1
      %p72 = por %p70, %p71
      %p74 = scmp.ne.s32.totalorder %s57, %s73
      %p75 = scmp.eq.s32.totalorder %s23, 0
      %p76 = por %p74, %p75
      %s77 = ssub.s32 %s17, %s24
      %p78 = scmp.eq.s32.totalorder %s77, 0
      %s80 = sadd.s32 %s79, 1
      %s81 = scalar_select %p78, %s79, %s80
      %p84 = pneg %p78
      %p85 = scmp.eq.s32.totalorder %s17, 1
      %p86 = por %p84, %p85
      %p87 = scmp.ne.s32.totalorder %s79, %s82
      %p88 = scmp.eq.s32.totalorder %s17, 0
      %p89 = por %p87, %p88
      %p90 = scmp.ne.s32.totalorder %s79, %s82
      %p91 = scmp.eq.s32.totalorder %s22, 1
      %p92 = por %p90, %p91
      %p93 = scmp.ne.s32.totalorder %s82, %s83
      %p94 = scmp.eq.s32.totalorder %s22, 0
      %p95 = por %p93, %p94
      %p96 = scmp.ne.s32.totalorder %s82, %s83
      %p97 = scmp.eq.s32.totalorder %s23, 1
      %p98 = por %p96, %p97
      %p100 = scmp.ne.s32.totalorder %s83, %s99
      %p101 = scmp.eq.s32.totalorder %s23, 0
      %p102 = por %p100, %p101
      %p103 = scmp.le.s32.totalorder 1, %s17
      %p104 = scmp.lt.s32.totalorder %s17, 3
      %p105 = pnand %p103, %p104
      %p106 = pneg %p105
      // Predicated region
      $region9: #{tpu_custom_call.1} parent=5 // pred_check
        _
      $region10: #{tpu_custom_call.1} parent=5 // pred_check_branch
        %108 = sbr.rel (%p105) target = $region12
      $region11: #{tpu_custom_call.1} parent=5 // pred_region
        %s109 = ssub.s32 %s17, 1
      $region12: #{tpu_custom_call.1} parent=5 // pred_fallthru
        _
      %p110 = scmp.lt.s32.totalorder %s17, 2
      // Predicated region
      $region13: #{tpu_custom_call.1} parent=5 // pred_check
        %p111 = pneg %p110
      $region14: #{tpu_custom_call.1} parent=5 // pred_check_branch
        %113 = sbr.rel (%p111) target = $region16
      $region15: #{tpu_custom_call.1} parent=5 // pred_region
        // Predicated region
        $region17: #{tpu_custom_call.1} parent=15 // pred_check
          %p114 = pneg %p37
        $region18: #{tpu_custom_call.1} parent=15 // pred_check_branch
          %116 = sbr.rel (%p114) target = $region20
        $region19: #{tpu_custom_call.1} parent=15 // pred_region
          %s117 = sand.u32 %s27, 1
          %s118 = scalar_lea.sflag [#allocation3], %s117
          %s119 = sand.u32 %s27, 1
          %s120 = smul.addr %s119, 8
          %s121 = scalar_lea.vmem [#allocation2], %s120
          %123 = vsyncadd %s118, 0
          %s124 = smul.addr %s17, 8
          %s125 = scalar_lea.hbm %s0, %s124
          %s127 = sshll.u32 %s125, 4
          %s128 = int_to_ptr.hbm [resolvable:$true] %s127
          %s129 = sshll.u32 %s121, 4
          %s130 = int_to_ptr.vmem [resolvable:$true] %s129
          %132 = dma.hbm_to_vmem [thread:$0]  %s128, 128, %s130, %s118
        $region20: #{tpu_custom_call.1} parent=15 // pred_fallthru
          _
        // Predicated region
        $region21: #{tpu_custom_call.1} parent=15 // pred_check
          %p133 = pneg %p63
        $region22: #{tpu_custom_call.1} parent=15 // pred_check_branch
          %135 = sbr.rel (%p133) target = $region24
        $region23: #{tpu_custom_call.1} parent=15 // pred_region
          %s136 = sand.u32 %s53, 1
          %s137 = scalar_lea.sflag [#allocation6], %s136
          %s138 = sand.u32 %s53, 1
          %s139 = smul.addr %s138, 8
          %s140 = scalar_lea.vmem [#allocation5], %s139
          %142 = vsyncadd %s137, 0
          %s143 = smul.addr %s17, 8
          %s144 = scalar_lea.hbm %s1, %s143
          %s146 = sshll.u32 %s144, 4
          %s147 = int_to_ptr.hbm [resolvable:$true] %s146
          %s148 = sshll.u32 %s140, 4
          %s149 = int_to_ptr.vmem [resolvable:$true] %s148
          %151 = dma.hbm_to_vmem [thread:$0]  %s147, 128, %s149, %s137
        $region24: #{tpu_custom_call.1} parent=15 // pred_fallthru
          _
      $region16: #{tpu_custom_call.1} parent=5 // pred_fallthru
        _
      %p152 = scmp.le.s32.totalorder 1, %s17
      %p153 = scmp.lt.s32.totalorder %s17, 3
      %p154 = pnand %p152, %p153
      %p155 = pneg %p154
      // Predicated region
      $region25: #{tpu_custom_call.1} parent=5 // pred_check
        _
      $region26: #{tpu_custom_call.1} parent=5 // pred_check_branch
        %157 = sbr.rel (%p154) target = $region28
      $region27: #{tpu_custom_call.1} parent=5 // pred_region
        %s158 = ssub.s32 %s17, 1
        %s159 = sand.u32 %s30, 1
        %s160 = scalar_lea.sflag [#allocation3], %s159
        %s161 = sand.u32 %s30, 1
        %s162 = smul.addr %s161, 8
        %s163 = scalar_lea.vmem [#allocation2], %s162
        // Predicated region
        $region29: #{tpu_custom_call.1} parent=27 // pred_check
          %p164 = pneg %p43
        $region30: #{tpu_custom_call.1} parent=27 // pred_check_branch
          %166 = sbr.rel (%p164) target = $region32
        $region31: #{tpu_custom_call.1} parent=27 // pred_region
          %168 = dma.done %s160, 128
        $region32: #{tpu_custom_call.1} parent=27 // pred_fallthru
          _
        %s169 = sand.u32 %s56, 1
        %s170 = scalar_lea.sflag [#allocation6], %s169
        %s171 = sand.u32 %s56, 1
        %s172 = smul.addr %s171, 8
        %s173 = scalar_lea.vmem [#allocation5], %s172
        // Predicated region
        $region33: #{tpu_custom_call.1} parent=27 // pred_check
          %p174 = pneg %p69
        $region34: #{tpu_custom_call.1} parent=27 // pred_check_branch
          %176 = sbr.rel (%p174) target = $region36
        $region35: #{tpu_custom_call.1} parent=27 // pred_region
          %178 = dma.done %s170, 128
        $region36: #{tpu_custom_call.1} parent=27 // pred_fallthru
          _
        %s179 = sand.u32 %s30, 1
        %s180 = scalar_lea.sflag [#allocation3], %s179
        %s181 = sand.u32 %s30, 1
        %s182 = smul.addr %s181, 8
        %s183 = scalar_lea.vmem [#allocation2], %s182
        %p184 = pneg %p43
        %p185 = pneg %p40
        %s186 = sand.u32 %s56, 1
        %s187 = scalar_lea.sflag [#allocation6], %s186
        %s188 = sand.u32 %s56, 1
        %s189 = smul.addr %s188, 8
        %s190 = scalar_lea.vmem [#allocation5], %s189
        %p191 = pneg %p69
        %p192 = pneg %p66
        %p193 = pneg %p95
        %p194 = pneg %p92
        %s195 = sand.u32 %s82, 1
        %s196 = scalar_lea.sflag [#allocation4], %s195
        %s197 = sand.u32 %s82, 1
        %s198 = smul.addr %s197, 8
        %s199 = scalar_lea.vmem [#allocation7], %s198
        %v200 = vld [vmem:[%s163] sm:$0xff]
        %v201 = vld [vmem:[%s173] sm:$0xff]
        %v202 = vand.u32 2147483647, %v200
        %v203 = vsub.f32 0.0, %v202
        %v204 = vmul.f32 %v203, 1.442695
        %v205 = vpow.pop %v204
        %v206 = vmax.f32 %v200, 0.0
        %v207 = vmul.f32 %v200, %v201
        %v208 = vsub.f32 %v206, %v207
        %v209 = vadd.f32 %v205, 1.0
        %v210 = vlog2.pop %v209
        %v211 = vmul.f32 %v210, 0.6931472
        %v212 = vmul.f32 -0.5, %v205
        %v213 = vadd.f32 %v212, 1.0
        %v214 = vmul.f32 %v213, %v205
        %v215 = vand.u32 2147483647, %v205
        %vm216 = vcmp.lt.f32.partialorder %v215, 0.0004427343
        %v217 = vsel %vm216, %v214, %v211
        %v218 = vadd.f32 %v208, %v217
        %v219 = vadd.f32 %v205, 1.0
        %v220 = vrcp.pop %v219
        %v221 = vmul.f32 %v219, %v220
        %v222 = vsub.f32 1.0, %v221
        %v223 = vmul.f32 %v220, %v222
        %v224 = vadd.f32 %v220, %v223
        %vm225 = vweird.f32 %v219
        %vm226 = vweird.f32 %v220
        %vm227 = vmor %vm225, %vm226
        %v228 = vsel %vm227, %v220, %v224
        %v229 = vand.u32 2147483647, %v219
        %vm230 = vcmp.eq.f32.partialorder %v229, 8.507059e+37
        %v231 = vand.u32 %v219, 2147483648
        %v232 = vor.u32 1.1754944e-38, %v231
        %v233 = vsel %vm230, %v232, %v228
        %vm234 = vcmp.ge.f32.partialorder %v200, 0.0
        %v235 = vmul.f32 %v205, %v233
        %v236 = vsel %vm234, %v233, %v235
        %v237 = vmul.f32 %v201, 2.0
        %v238 = vsub.f32 %v237, 1.0
        %v239 = vmul.f32 %v236, %v238
        %v240 = vsub.f32 %v201, %v239
        %v241 = vmul.f32 %v201, -0.5
        %v242 = vadd.f32 %v241, 0.75
        %v243 = vmul.f32 %v240, %v240
        %v244 = vmul.f32 %v242, %v243
        %v245 = vmul.f32 %v244, %v218
        %v246 = vadd.f32 %v245, 0.0
        %247 = vst [vmem:[%s199] sm:$0xff] %v246
        %s248 = sand.u32 %s82, 1
        %s249 = scalar_lea.sflag [#allocation4], %s248
        %s250 = sand.u32 %s82, 1
        %s251 = smul.addr %s250, 8
        %s252 = scalar_lea.vmem [#allocation7], %s251
        // Predicated region
        $region37: #{tpu_custom_call.1} parent=27 // pred_check
          %p253 = pneg %p92
        $region38: #{tpu_custom_call.1} parent=27 // pred_check_branch
          %255 = sbr.rel (%p253) target = $region40
        $region39: #{tpu_custom_call.1} parent=27 // pred_region
          %257 = vsyncadd %s249, 0
          %s258 = smul.addr %s22, 8
          %s259 = scalar_lea.hbm %s2, %s258
          %s261 = sshll.u32 %s252, 4
          %s262 = int_to_ptr.vmem [resolvable:$true] %s261
          %s263 = sshll.u32 %s259, 4
          %s264 = int_to_ptr.hbm [resolvable:$true] %s263
          %266 = dma.vmem_to_hbm [thread:$0]  %s262, 128, %s264, %s249
        $region40: #{tpu_custom_call.1} parent=27 // pred_fallthru
          _
      $region28: #{tpu_custom_call.1} parent=5 // pred_fallthru
        _
      %p267 = scmp.le.s32.totalorder 2, %s17
      // Predicated region
      $region41: #{tpu_custom_call.1} parent=5 // pred_check
        %p268 = pneg %p267
      $region42: #{tpu_custom_call.1} parent=5 // pred_check_branch
        %270 = sbr.rel (%p268) target = $region44
      $region43: #{tpu_custom_call.1} parent=5 // pred_region
        %s271 = ssub.s32 %s17, 2
        // Predicated region
        $region45: #{tpu_custom_call.1} parent=43 // pred_check
          %p272 = pneg %p98
        $region46: #{tpu_custom_call.1} parent=43 // pred_check_branch
          %274 = sbr.rel (%p272) target = $region48
        $region47: #{tpu_custom_call.1} parent=43 // pred_region
          %s275 = sand.u32 %s83, 1
          %s276 = scalar_lea.sflag [#allocation4], %s275
          %s277 = sand.u32 %s83, 1
          %s278 = smul.addr %s277, 8
          %s279 = scalar_lea.vmem [#allocation7], %s278
          %281 = dma.done %s276, 128
        $region48: #{tpu_custom_call.1} parent=43 // pred_fallthru
          _
      $region44: #{tpu_custom_call.1} parent=5 // pred_fallthru
        _
    $region6: #{tpu_custom_call.1} parent=1 // loop_footer
      %s21 = sadd.s32 1, %s17
    $region7: #{tpu_custom_call.1} parent=1 // loop_footer_branch
      %16 = sbr.rel target = $region3
    $region8: #{tpu_custom_call.1} parent=1 // loop_exit
      _
    %282 = vsyncpa [#allocation3], 1
    %s283 = scalar_lea.sflag [#allocation3], 1
    %284 = vsyncpa %s283, 1
    %285 = vsyncpa [#allocation6], 1
    %s286 = scalar_lea.sflag [#allocation6], 1
    %287 = vsyncpa %s286, 1
    %288 = vsyncpa [#allocation4], 1
    %s289 = scalar_lea.sflag [#allocation4], 1
    %290 = vsyncpa %s289, 1

</llo_original>
